<compile_context>
chip_gen: v5e
topology: v5e:2x2
jax: 0.10.0
libtpu: 0.0.40
codegen_flags: <defaults>
</compile_context>

<pallas_src>
import functools
import math

import jax
import jax.numpy as jnp
from jax.experimental import pallas as pl
from jax.experimental.pallas import tpu as pltpu


def _round_up(x, m):
    return ((x + m - 1) // m) * m


def _pick_seq_tile(s, preferred):
    for t in (preferred, 512, 256, 128, 64, 32, 16, 8):
        if t <= s and s % t == 0:
            return t
    return s  # full-dim fallback (exempt from the (8,128) rule)


def _flash_attention_kernel(xq_ref, xkv_ref, w_ref, b_ref, o_ref,
                            q_sc, m_sc, l_sc, acc_sc, *, dp, scale_inv):
    """One grid step: (batch b, query tile qi, kv tile ki).

    xq_ref : (1, TQ, Dp)  rows used for the Q projection
    xkv_ref: (1, TK, Dp)  rows used for the K/V projection
    w_ref  : (Dp, 3*Dp)   fused, lane-padded [Wq | Wk | Wv] (in x out layout)
    b_ref  : (1, 3*Dp)    fused, lane-padded biases
    o_ref  : (1, TQ, Dp)
    """
    ki = pl.program_id(2)

    @pl.when(ki == 0)
    def _init():
        # Q projection for this query tile -- computed once, cached across KV.
        xq = xq_ref[0]                                        # (TQ, Dp)
        q = jnp.dot(xq, w_ref[:, :dp],
                    preferred_element_type=jnp.float32)
        q = q + b_ref[:, :dp].astype(jnp.float32)
        # Fold 1/sqrt(D) into Q (O(TQ*D)) instead of scaling (TQ,TK) scores.
        q_sc[...] = (q * scale_inv).astype(q_sc.dtype)
        m_sc[...] = jnp.full(m_sc.shape, -jnp.inf, dtype=m_sc.dtype)
        l_sc[...] = jnp.zeros(l_sc.shape, dtype=l_sc.dtype)
        acc_sc[...] = jnp.zeros(acc_sc.shape, dtype=acc_sc.dtype)

    # Fused K/V projection for this KV tile: one (TK,Dp)@(Dp,2*Dp) MXU pass.
    xkv = xkv_ref[0]                                          # (TK, Dp)
    kv = jnp.dot(xkv, w_ref[:, dp:3 * dp],
                 preferred_element_type=jnp.float32)
    kv = kv + b_ref[:, dp:3 * dp].astype(jnp.float32)         # (TK, 2*Dp) f32
    k = kv[:, :dp].astype(xkv.dtype)                          # 128-aligned slices
    v = kv[:, dp:2 * dp].astype(xkv.dtype)

    # Scores: contract last dims of q and k directly (no k.T / XLU transpose).
    q = q_sc[...]
    s = jax.lax.dot_general(q, k, (((1,), (1,)), ((), ())),
                            preferred_element_type=jnp.float32)  # (TQ, TK)

    # Online (flash) softmax update.
    m_prev = m_sc[...]
    m_new = jnp.maximum(m_prev, jnp.max(s, axis=-1, keepdims=True))
    alpha = jnp.exp(m_prev - m_new)
    p = jnp.exp(s - m_new)                                    # (TQ, TK) f32
    l_sc[...] = alpha * l_sc[...] + jnp.sum(p, axis=-1, keepdims=True)
    acc_sc[...] = alpha * acc_sc[...] + jnp.dot(
        p.astype(v.dtype), v, preferred_element_type=jnp.float32)
    m_sc[...] = m_new

    @pl.when(ki == pl.num_programs(2) - 1)
    def _finalize():
        # Normalize once on the (TQ, Dp) output instead of dividing the (TQ, TK)
        # probability matrix.  (approx=True would move this to the EUP slot but
        # exact keeps us within 1e-5 of the reference.)
        inv_l = pl.reciprocal(l_sc[...], approx=False)
        o_ref[0] = (acc_sc[...] * inv_l).astype(o_ref.dtype)


def attention_forward(x, wq, bq, wk, bk, wv, bv, *, tq=128, tk=128):
    """x: (B, S, D); w*: PyTorch-style (D_out, D_in) weights; b*: (D,)."""
    B, S, D = x.shape
    scale_inv = 1.0 / math.sqrt(float(D))

    # Lane-align the feature dim (multiple of 128) with zero padding so every
    # matmul operand/output is lane-dense and q/k/v slices are 128-aligned.
    # Zero weight columns + zero bias entries make padding mathematically inert.
    Dp = _round_up(max(D, 128), 128)
    pad_d = Dp - D

    def prep_w(w):  # (out, in) -> transposed + padded (Dp_in, Dp_out)
        wt = jnp.asarray(w).T
        return jnp.pad(wt, ((0, pad_d), (0, pad_d))) if pad_d else wt

    def prep_b(b):
        b = jnp.asarray(b)
        return jnp.pad(b, (0, pad_d)) if pad_d else b

    w_qkv = jnp.concatenate([prep_w(wq), prep_w(wk), prep_w(wv)], axis=1)
    w_qkv = w_qkv.astype(x.dtype)                      # bf16 in -> bf16 MXU
    b_qkv = jnp.concatenate([prep_b(bq), prep_b(bk), prep_b(bv)])
    b_qkv = b_qkv.reshape(1, 3 * Dp).astype(x.dtype)

    x_p = jnp.pad(x, ((0, 0), (0, 0), (0, pad_d))) if pad_d else x

    TQ = _pick_seq_tile(S, tq)
    TK = _pick_seq_tile(S, tk)
    grid = (B, S // TQ, S // TK)

    kernel = functools.partial(_flash_attention_kernel, dp=Dp, scale_inv=scale_inv)

    x_q_spec = pl.BlockSpec((1, TQ, Dp), lambda b, qi, ki: (b, qi, 0))
    x_kv_spec = pl.BlockSpec((1, TK, Dp), lambda b, qi, ki: (b, ki, 0))
    w_spec = pl.BlockSpec((Dp, 3 * Dp), lambda b, qi, ki: (0, 0))
    b_spec = pl.BlockSpec((1, 3 * Dp), lambda b, qi, ki: (0, 0))
    o_spec = pl.BlockSpec((1, TQ, Dp), lambda b, qi, ki: (b, qi, 0))

    itemsize = x_p.dtype.itemsize
    cost = pl.CostEstimate(
        flops=2 * B * S * (3 * Dp * Dp + 2 * S * Dp),
        transcendentals=B * S * S,
        bytes_accessed=(2 * B * S * Dp + Dp * 3 * Dp + 3 * Dp) * itemsize,
    )

    # Explicit VMEM budget: double-buffered tiles + fused weights + scratch,
    # clamped so it is valid on v5e/v6e (128 MiB) and v7x (64 MiB).
    tile_bytes = (2 * TQ * Dp + TK * Dp) * itemsize
    w_bytes = (Dp * 3 * Dp + 3 * Dp) * itemsize
    scratch_bytes = TQ * Dp * itemsize + (TQ * Dp + 2 * TQ) * 4
    vmem_limit = int(min(max(2 * (tile_bytes + w_bytes) + scratch_bytes + (4 << 20),
                             16 << 20), 64 << 20))

    out = pl.pallas_call(
        kernel,
        out_shape=jax.ShapeDtypeStruct((B, S, Dp), x.dtype),
        grid_spec=pltpu.PrefetchScalarGridSpec(
            num_scalar_prefetch=0,
            grid=grid,
            in_specs=[x_q_spec, x_kv_spec, w_spec, b_spec],
            out_specs=o_spec,
            scratch_shapes=[
                pltpu.VMEM((TQ, Dp), x.dtype),       # cached (scaled) Q tile
                pltpu.VMEM((TQ, 1), jnp.float32),    # running max
                pltpu.VMEM((TQ, 1), jnp.float32),    # running denominator
                pltpu.VMEM((TQ, Dp), jnp.float32),   # output accumulator
            ]),
        compiler_params=pltpu.CompilerParams(
            dimension_semantics=("parallel", "parallel", "arbitrary"),
            vmem_limit_bytes=vmem_limit),
        cost_estimate=cost,
    )(x_p, x_p, w_qkv, b_qkv)

    return out[..., :D] if pad_d else out


def attention_reference(x, wq, bq, wk, bk, wv, bv):
    """Pure-JAX reference mirroring the PyTorch forward."""
    D = x.shape[-1]
    q = x @ wq.T + bq
    k = x @ wk.T + bk
    v = x @ wv.T + bv
    scores = (q @ jnp.swapaxes(k, -2, -1)) / (D ** 0.5)
    attn = jax.nn.softmax(scores, axis=-1)
    return attn @ v


if __name__ == "__main__":
    key = jax.random.PRNGKey(0)
    B, S, D = 2, 8, 32

    keys = jax.random.split(key, 7)
    x = jax.random.normal(keys[0], (B, S, D), dtype=jnp.float32)

    # Deterministic "Linear" parameters (PyTorch layout: weight (out, in)).
    bound = 1.0 / (D ** 0.5)
    wq = jax.random.uniform(keys[1], (D, D), minval=-bound, maxval=bound)
    bq = jax.random.uniform(keys[2], (D,), minval=-bound, maxval=bound)
    wk = jax.random.uniform(keys[3], (D, D), minval=-bound, maxval=bound)
    bk = jax.random.uniform(keys[4], (D,), minval=-bound, maxval=bound)
    wv = jax.random.uniform(keys[5], (D, D), minval=-bound, maxval=bound)
    bv = jax.random.uniform(keys[6], (D,), minval=-bound, maxval=bound)

    out = attention_forward(x, wq, bq, wk, bk, wv, bv)
    out = jax.block_until_ready(out)

    ref = attention_reference(x, wq, bq, wk, bk, wv, bv)
    assert out.shape == (B, S, D)
    assert jnp.allclose(out, ref, atol=1e-5, rtol=1e-5), \
        f"max abs err {jnp.max(jnp.abs(out - ref))}"

    print("KERNEL_OK")
</pallas_src>

<mosaic_0001>
module attributes {stable_mosaic.version = 11 : i64} {
  func.func @_flash_attention_kernel(%arg0: i32, %arg1: i32, %arg2: i32, %arg3: memref<1x8x128xf32, #tpu.memory_space<vmem>>, %arg4: memref<1x8x128xf32, #tpu.memory_space<vmem>>, %arg5: memref<128x384xf32, #tpu.memory_space<vmem>>, %arg6: memref<1x384xf32, #tpu.memory_space<vmem>>, %arg7: memref<1x8x128xf32, #tpu.memory_space<vmem>>, %arg8: memref<8x128xf32, #tpu.memory_space<vmem>>, %arg9: memref<8x1xf32, #tpu.memory_space<vmem>>, %arg10: memref<8x1xf32, #tpu.memory_space<vmem>>, %arg11: memref<8x128xf32, #tpu.memory_space<vmem>>) attributes {dimension_semantics = [#tpu.dimension_semantics<parallel>, #tpu.dimension_semantics<parallel>, #tpu.dimension_semantics<arbitrary>], iteration_bounds = array<i64: 2, 1, 1>, scalar_prefetch = 0 : i64, scratch_operands = 4 : i64, tpu.core_type = #tpu.core_type<tc>, window_params = [{transform_indices = @transform_0, window_bounds = array<i64: 1, 8, 128>}, {transform_indices = @transform_1, window_bounds = array<i64: 1, 8, 128>}, {pipeline_mode = #tpu.pipeline_mode<synchronous>, transform_indices = @transform_2, window_bounds = array<i64: 128, 384>}, {pipeline_mode = #tpu.pipeline_mode<synchronous>, transform_indices = @transform_3, window_bounds = array<i64: 1, 384>}, {transform_indices = @transform_4, window_bounds = array<i64: 1, 8, 128>}]} {
    %c0_i32 = arith.constant 0 : i32
    %0 = arith.cmpi eq, %arg2, %c0_i32 : i32
    %1 = arith.extui %0 : i1 to i32
    %c0_i32_0 = arith.constant 0 : i32
    %2 = arith.cmpi ne, %1, %c0_i32_0 : i32
    scf.if %2 {
      %c0_26 = arith.constant 0 : index
      %c0_27 = arith.constant 0 : index
      %c0_28 = arith.constant 0 : index
      %39 = vector.load %arg3[%c0_26, %c0_27, %c0_28] : memref<1x8x128xf32, #tpu.memory_space<vmem>>, vector<1x8x128xf32>
      %40 = vector.shape_cast %39 : vector<1x8x128xf32> to vector<8x128xf32>
      %c0_29 = arith.constant 0 : index
      %c0_30 = arith.constant 0 : index
      %41 = vector.load %arg5[%c0_29, %c0_30] : memref<128x384xf32, #tpu.memory_space<vmem>>, vector<128x128xf32>
      %cst_31 = arith.constant dense<0.000000e+00> : vector<8x128xf32>
      %42 = tpu.matmul %40, %41, %cst_31 {dimension_numbers = #tpu.dot_dimension_numbers<[1], [0], [0], [1], [0, 0, 1, 1], [], []>} : vector<8x128xf32>, vector<128x128xf32>, vector<8x128xf32> -> vector<8x128xf32>
      %c0_32 = arith.constant 0 : index
      %c0_33 = arith.constant 0 : index
      %43 = vector.load %arg6[%c0_32, %c0_33] : memref<1x384xf32, #tpu.memory_space<vmem>>, vector<1x128xf32>
      %44 = vector.broadcast %43 : vector<1x128xf32> to vector<8x128xf32>
      %45 = arith.addf %42, %44 : vector<8x128xf32>
      %cst_34 = arith.constant 0.176776692 : f32
      %46 = vector.broadcast %cst_34 : f32 to vector<8x128xf32>
      %47 = arith.mulf %45, %46 : vector<8x128xf32>
      %c0_35 = arith.constant 0 : index
      %c0_36 = arith.constant 0 : index
      %48 = vector.load %arg8[%c0_35, %c0_36] : memref<8x128xf32, #tpu.memory_space<vmem>>, vector<8x128xf32>
      tpu.vector_store %arg8[%c0_35, %c0_36], %47 {strides = array<i32>} : memref<8x128xf32, #tpu.memory_space<vmem>>, vector<8x128xf32>,
      %cst_37 = arith.constant 0xFF800000 : f32
      %49 = vector.broadcast %cst_37 : f32 to vector<8x1xf32>
      %c0_38 = arith.constant 0 : index
      %c0_39 = arith.constant 0 : index
      %50 = vector.load %arg9[%c0_38, %c0_39] : memref<8x1xf32, #tpu.memory_space<vmem>>, vector<8x1xf32>
      tpu.vector_store %arg9[%c0_38, %c0_39], %49 {strides = array<i32>} : memref<8x1xf32, #tpu.memory_space<vmem>>, vector<8x1xf32>,
      %cst_40 = arith.constant 0.000000e+00 : f32
      %51 = vector.broadcast %cst_40 : f32 to vector<8x1xf32>
      %c0_41 = arith.constant 0 : index
      %c0_42 = arith.constant 0 : index
      %52 = vector.load %arg10[%c0_41, %c0_42] : memref<8x1xf32, #tpu.memory_space<vmem>>, vector<8x1xf32>
      tpu.vector_store %arg10[%c0_41, %c0_42], %51 {strides = array<i32>} : memref<8x1xf32, #tpu.memory_space<vmem>>, vector<8x1xf32>,
      %cst_43 = arith.constant 0.000000e+00 : f32
      %53 = vector.broadcast %cst_43 : f32 to vector<8x128xf32>
      %c0_44 = arith.constant 0 : index
      %c0_45 = arith.constant 0 : index
      %54 = vector.load %arg11[%c0_44, %c0_45] : memref<8x128xf32, #tpu.memory_space<vmem>>, vector<8x128xf32>
      tpu.vector_store %arg11[%c0_44, %c0_45], %53 {strides = array<i32>} : memref<8x128xf32, #tpu.memory_space<vmem>>, vector<8x128xf32>,
    } else {
    }
    %c0 = arith.constant 0 : index
    %c0_1 = arith.constant 0 : index
    %c0_2 = arith.constant 0 : index
    %3 = vector.load %arg4[%c0, %c0_1, %c0_2] : memref<1x8x128xf32, #tpu.memory_space<vmem>>, vector<1x8x128xf32>
    %4 = vector.shape_cast %3 : vector<1x8x128xf32> to vector<8x128xf32>
    %c0_3 = arith.constant 0 : index
    %c128 = arith.constant 128 : index
    %5 = vector.load %arg5[%c0_3, %c128] : memref<128x384xf32, #tpu.memory_space<vmem>>, vector<128x256xf32>
    %cst = arith.constant dense<0.000000e+00> : vector<8x256xf32>
    %6 = tpu.matmul %4, %5, %cst {dimension_numbers = #tpu.dot_dimension_numbers<[1], [0], [0], [1], [0, 0, 1, 1], [], []>} : vector<8x128xf32>, vector<128x256xf32>, vector<8x256xf32> -> vector<8x256xf32>
    %c0_4 = arith.constant 0 : index
    %c128_5 = arith.constant 128 : index
    %7 = vector.load %arg6[%c0_4, %c128_5] : memref<1x384xf32, #tpu.memory_space<vmem>>, vector<1x256xf32>
    %8 = vector.broadcast %7 : vector<1x256xf32> to vector<8x256xf32>
    %9 = arith.addf %6, %8 : vector<8x256xf32>
    %10 = vector.extract_strided_slice %9 {offsets = [0, 0], sizes = [8, 128], strides = [1, 1]} : vector<8x256xf32> to vector<8x128xf32>
    %11 = vector.extract_strided_slice %9 {offsets = [0, 128], sizes = [8, 128], strides = [1, 1]} : vector<8x256xf32> to vector<8x128xf32>
    %c0_6 = arith.constant 0 : index
    %c0_7 = arith.constant 0 : index
    %12 = vector.load %arg8[%c0_6, %c0_7] : memref<8x128xf32, #tpu.memory_space<vmem>>, vector<8x128xf32>
    %cst_8 = arith.constant dense<0.000000e+00> : vector<8x8xf32>
    %13 = tpu.matmul %12, %10, %cst_8 {dimension_numbers = #tpu.dot_dimension_numbers<[1], [1], [0], [0], [0, 0, 1, 0], [], []>} : vector<8x128xf32>, vector<8x128xf32>, vector<8x8xf32> -> vector<8x8xf32>
    %c0_9 = arith.constant 0 : index
    %c0_10 = arith.constant 0 : index
    %14 = vector.load %arg9[%c0_9, %c0_10] : memref<8x1xf32, #tpu.memory_space<vmem>>, vector<8x1xf32>
    %cst_11 = arith.constant dense<0xFF800000> : vector<8xf32>
    %15 = vector.multi_reduction <maximumf>, %13, %cst_11 [1] : vector<8x8xf32> to vector<8xf32>
    %16 = vector.shape_cast %15 : vector<8xf32> to vector<8x1xf32>
    %17 = arith.maximumf %14, %16 : vector<8x1xf32>
    %18 = arith.subf %14, %17 : vector<8x1xf32>
    %19 = math.exp %18 : vector<8x1xf32>
    %20 = vector.broadcast %17 : vector<8x1xf32> to vector<8x8xf32>
    %21 = arith.subf %13, %20 : vector<8x8xf32>
    %22 = math.exp %21 : vector<8x8xf32>
    %c0_12 = arith.constant 0 : index
    %c0_13 = arith.constant 0 : index
    %23 = vector.load %arg10[%c0_12, %c0_13] : memref<8x1xf32, #tpu.memory_space<vmem>>, vector<8x1xf32>
    %24 = arith.mulf %19, %23 : vector<8x1xf32>
    %cst_14 = arith.constant dense<0.000000e+00> : vector<8xf32>
    %25 = vector.multi_reduction <add>, %22, %cst_14 [1] : vector<8x8xf32> to vector<8xf32>
    %26 = vector.shape_cast %25 : vector<8xf32> to vector<8x1xf32>
    %27 = arith.addf %24, %26 : vector<8x1xf32>
    %c0_15 = arith.constant 0 : index
    %c0_16 = arith.constant 0 : index
    %28 = vector.load %arg10[%c0_15, %c0_16] : memref<8x1xf32, #tpu.memory_space<vmem>>, vector<8x1xf32>
    tpu.vector_store %arg10[%c0_15, %c0_16], %27 {strides = array<i32>} : memref<8x1xf32, #tpu.memory_space<vmem>>, vector<8x1xf32>,
    %c0_17 = arith.constant 0 : index
    %c0_18 = arith.constant 0 : index
    %29 = vector.load %arg11[%c0_17, %c0_18] : memref<8x128xf32, #tpu.memory_space<vmem>>, vector<8x128xf32>
    %30 = vector.broadcast %19 : vector<8x1xf32> to vector<8x128xf32>
    %31 = arith.mulf %30, %29 : vector<8x128xf32>
    %cst_19 = arith.constant dense<0.000000e+00> : vector<8x128xf32>
    %32 = tpu.matmul %22, %11, %cst_19 {dimension_numbers = #tpu.dot_dimension_numbers<[1], [0], [0], [1], [0, 0, 1, 1], [], []>} : vector<8x8xf32>, vector<8x128xf32>, vector<8x128xf32> -> vector<8x128xf32>
    %33 = arith.addf %31, %32 : vector<8x128xf32>
    %c0_20 = arith.constant 0 : index
    %c0_21 = arith.constant 0 : index
    %34 = vector.load %arg11[%c0_20, %c0_21] : memref<8x128xf32, #tpu.memory_space<vmem>>, vector<8x128xf32>
    tpu.vector_store %arg11[%c0_20, %c0_21], %33 {strides = array<i32>} : memref<8x128xf32, #tpu.memory_space<vmem>>, vector<8x128xf32>,
    %c0_22 = arith.constant 0 : index
    %c0_23 = arith.constant 0 : index
    %35 = vector.load %arg9[%c0_22, %c0_23] : memref<8x1xf32, #tpu.memory_space<vmem>>, vector<8x1xf32>
    tpu.vector_store %arg9[%c0_22, %c0_23], %17 {strides = array<i32>} : memref<8x1xf32, #tpu.memory_space<vmem>>, vector<8x1xf32>,
    %c0_i32_24 = arith.constant 0 : i32
    %36 = arith.cmpi eq, %arg2, %c0_i32_24 : i32
    %37 = arith.extui %36 : i1 to i32
    %c0_i32_25 = arith.constant 0 : i32
    %38 = arith.cmpi ne, %37, %c0_i32_25 : i32
    scf.if %38 {
      %c0_26 = arith.constant 0 : index
      %c0_27 = arith.constant 0 : index
      %39 = vector.load %arg10[%c0_26, %c0_27] : memref<8x1xf32, #tpu.memory_space<vmem>>, vector<8x1xf32>
      %40 = tpu.reciprocal %39 : vector<8x1xf32> -> vector<8x1xf32>
      %c0_28 = arith.constant 0 : index
      %c0_29 = arith.constant 0 : index
      %41 = vector.load %arg11[%c0_28, %c0_29] : memref<8x128xf32, #tpu.memory_space<vmem>>, vector<8x128xf32>
      %42 = vector.broadcast %40 : vector<8x1xf32> to vector<8x128xf32>
      %43 = arith.mulf %41, %42 : vector<8x128xf32>
      %c0_30 = arith.constant 0 : index
      %c0_31 = arith.constant 0 : index
      %c0_32 = arith.constant 0 : index
      %44 = vector.load %arg7[%c0_30, %c0_31, %c0_32] : memref<1x8x128xf32, #tpu.memory_space<vmem>>, vector<1x8x128xf32>
      %45 = vector.shape_cast %44 : vector<1x8x128xf32> to vector<8x128xf32>
      %46 = vector.shape_cast %43 : vector<8x128xf32> to vector<1x8x128xf32>
      tpu.vector_store %arg7[%c0_30, %c0_31, %c0_32], %46 {strides = array<i32>} : memref<1x8x128xf32, #tpu.memory_space<vmem>>, vector<1x8x128xf32>,
    } else {
    }
    return
  }
  func.func @transform_0(%arg0: i32, %arg1: i32, %arg2: i32) -> (i32, i32, i32) {
    %c0_i32 = arith.constant 0 : i32
    %c0_i32_0 = arith.constant 0 : i32
    return %arg0, %arg1, %c0_i32 : i32, i32, i32
  }
  func.func @transform_1(%arg0: i32, %arg1: i32, %arg2: i32) -> (i32, i32, i32) {
    %c0_i32 = arith.constant 0 : i32
    %c0_i32_0 = arith.constant 0 : i32
    return %arg0, %arg2, %c0_i32 : i32, i32, i32
  }
  func.func @transform_2(%arg0: i32, %arg1: i32, %arg2: i32) -> (i32, i32) {
    %c0_i32 = arith.constant 0 : i32
    %c0_i32_0 = arith.constant 0 : i32
    %c0_i32_1 = arith.constant 0 : i32
    return %c0_i32, %c0_i32_0 : i32, i32
  }
  func.func @transform_3(%arg0: i32, %arg1: i32, %arg2: i32) -> (i32, i32) {
    %c0_i32 = arith.constant 0 : i32
    %c0_i32_0 = arith.constant 0 : i32
    %c0_i32_1 = arith.constant 0 : i32
    return %c0_i32, %c0_i32_0 : i32, i32
  }
  func.func @transform_4(%arg0: i32, %arg1: i32, %arg2: i32) -> (i32, i32, i32) {
    %c0_i32 = arith.constant 0 : i32
    %c0_i32_0 = arith.constant 0 : i32
    return %arg0, %arg1, %c0_i32 : i32, i32, i32
  }
}

</mosaic_0001>

<llo_original>
// kernel: tpu_custom_call.1
$region0: #{tpu_custom_call.1}
  #allocation0 [shape = 'u32[]', space=smem, size = 0x4, offset = 0x4, fixed_abs, tag = 'smem constant byte address 0x4 - core index']
  #allocation1 [shape = 'u32[72,128]{1,0:T(1,128)}', space=vmem, size = 0x9000, scoped, tag = 'internal scratch']
  #allocation2 [shape = 'f32[8,128]{1,0:T(8,128)}', space=vmem, size = 0x1000, scoped, tag = 'scratch operand']
  #allocation3 [shape = 'f32[8,1]{1,0:T(8,128)}', space=vmem, size = 0x1000, scoped, tag = 'scratch operand']
  #allocation4 [shape = 'f32[8,1]{1,0:T(8,128)}', space=vmem, size = 0x1000, scoped, tag = 'scratch operand']
  #allocation5 [shape = 'f32[8,128]{1,0:T(8,128)}', space=vmem, size = 0x1000, scoped, tag = 'scratch operand']
  %s0 = inlined_call_operand.hbm [shape: f32[2,8,128], index: 0, kind: input, shape index: {}]
  %s1 = inlined_call_operand.hbm [shape: f32[2,8,128], index: 1, kind: input, shape index: {}]
  %s2 = inlined_call_operand.hbm [shape: f32[128,384], index: 2, kind: input, shape index: {}]
  %s3 = inlined_call_operand.hbm [shape: f32[1,384], index: 3, kind: input, shape index: {}]
  %s4 = inlined_call_operand.hbm [shape: f32[2,8,128], index: 4, kind: output, shape index: {}]
  %s5 = sld [smem:[#allocation0]]
  $region73: #{tpu_custom_call.1} parent=0
    _
  %s7 = ssub.s32 1, %s5
  %s8 = scalar_select 0, %s7, %s5
  $region1: #{tpu_custom_call.1} parent=0
    #allocation6 [shape = 'u8[8192]{0}', space=vmem, size = 0x2000, scoped, tag = 'input window, operand 0']
    #allocation7 [shape = 's32[2]{0}', space=sflag, size = 0x8, scoped, tag = 'scoped memory for tpu_custom_call.1']
    #allocation8 [shape = 's32[2]{0}', space=sflag, size = 0x8, scoped, tag = 'scoped memory for tpu_custom_call.1']
    #allocation9 [shape = 'u8[8192]{0}', space=vmem, size = 0x2000, scoped, tag = 'input window, operand 1']
    #allocation10 [shape = 's32[2]{0}', space=sflag, size = 0x8, scoped, tag = 'scoped memory for tpu_custom_call.1']
    #allocation11 [shape = 'u8[196608]{0}', space=vmem, size = 0x30000, scoped, tag = 'input window, operand 2, single buffered']
    #allocation12 [shape = 'u8[1536]{0}', space=vmem, size = 0x800, scoped, tag = 'input window, operand 3, single buffered']
    #allocation13 [shape = 's32[1]{0}', space=sflag, size = 0x4, scoped, tag = 'scoped memory for tpu_custom_call.1']
    #allocation14 [shape = 'u8[8192]{0}', space=vmem, size = 0x2000, scoped, tag = 'output window, operand 0']
    %9 = vsyncpa [#allocation7], 0
    %s10 = scalar_lea.sflag [#allocation7], 1
    %11 = vsyncpa %s10, 0
    %12 = vsyncpa [#allocation10], 0
    %s13 = scalar_lea.sflag [#allocation10], 1
    %14 = vsyncpa %s13, 0
    %15 = vsyncpa [#allocation13], 0
    %16 = vsyncpa [#allocation8], 0
    %s17 = scalar_lea.sflag [#allocation8], 1
    %18 = vsyncpa %s17, 0
    loop: start=0, step=1, limit=4
    $region2: #{tpu_custom_call.1} parent=1 // loop_pre_header
      _
    $region3: #{tpu_custom_call.1} parent=1 // loop_header
      %s20 = sphi 0, %s24
      %p21 = scmp.ge.s32.totalorder %s20, 4
      %s27 = sphi 0, %s46
      %s28 = sphi 0, %s42
      %s29 = sphi 0, %s38
      %s30 = sphi 0, %s27
      %s31 = sphi 0, %s28
      %s32 = sphi 0, %s29
      %s33 = sphi 0, %s30
      %s34 = sphi 0, %s31
      %s35 = sphi 0, %s32
      %s51 = sphi 0, %s53
      %s54 = sphi 0, %s51
      %s55 = sphi 0, %s54
      %s71 = sphi 0, %s55
      %s79 = sphi 0, %s81
      %s82 = sphi 0, %s79
      %s83 = sphi 0, %s82
      %s99 = sphi 0, %s83
      %s103 = sphi 0, %s103
      %s105 = sphi 0, %s103
      %s106 = sphi 0, %s105
      %s120 = sphi 0, %s106
      %s124 = sphi 0, %s124
      %s126 = sphi 0, %s124
      %s127 = sphi 0, %s126
      %s141 = sphi 0, %s127
      %s149 = sphi 0, %s151
      %s152 = sphi 0, %s149
      %s153 = sphi 0, %s152
      %s169 = sphi 0, %s153
    $region4: #{tpu_custom_call.1} parent=1 // loop_header_branch
      %23 = sbr.rel (%p21) target = $region8
    $region5: #{tpu_custom_call.1} parent=1 // loop_body
      %s25 = ssub.s32 %s20, 1
      %s26 = ssub.s32 %s20, 2
      %s36 = sadd.s32 1, %s29
      %p37 = scmp.ge.s32.totalorder %s36, 1
      %s38 = scalar_select %p37, 0, %s36
      %s39 = sadd.s32 1, %s28
      %s40 = scalar_select %p37, %s39, %s28
      %p41 = scmp.ge.s32.totalorder %s40, 1
      %s42 = scalar_select %p41, 0, %s40
      %s43 = sadd.s32 1, %s27
      %s44 = scalar_select %p41, %s43, %s27
      %p45 = scmp.ge.s32.totalorder %s44, 2
      %s46 = scalar_select %p45, 0, %s44
      %s47 = ssub.s32 %s27, %s46
      %s48 = ssub.s32 %s28, %s42
      %s49 = sor.u32 %s47, %s48
      %p50 = scmp.eq.s32.totalorder %s49, 0
      %s52 = sadd.s32 %s51, 1
      %s53 = scalar_select %p50, %s51, %s52
      %p56 = pneg %p50
      %p57 = scmp.eq.s32.totalorder %s20, 1
      %p58 = por %p56, %p57
      %p59 = scmp.ne.s32.totalorder %s51, %s54
      %p60 = scmp.eq.s32.totalorder %s20, 0
      %p61 = por %p59, %p60
      %p62 = scmp.ne.s32.totalorder %s51, %s54
      %p63 = scmp.eq.s32.totalorder %s25, 1
      %p64 = por %p62, %p63
      %p65 = scmp.ne.s32.totalorder %s54, %s55
      %p66 = scmp.eq.s32.totalorder %s25, 0
      %p67 = por %p65, %p66
      %p68 = scmp.ne.s32.totalorder %s54, %s55
      %p69 = scmp.eq.s32.totalorder %s26, 1
      %p70 = por %p68, %p69
      %p72 = scmp.ne.s32.totalorder %s55, %s71
      %p73 = scmp.eq.s32.totalorder %s26, 0
      %p74 = por %p72, %p73
      %s75 = ssub.s32 %s27, %s46
      %s76 = ssub.s32 %s29, %s38
      %s77 = sor.u32 %s75, %s76
      %p78 = scmp.eq.s32.totalorder %s77, 0
      %s80 = sadd.s32 %s79, 1
      %s81 = scalar_select %p78, %s79, %s80
      %p84 = pneg %p78
      %p85 = scmp.eq.s32.totalorder %s20, 1
      %p86 = por %p84, %p85
      %p87 = scmp.ne.s32.totalorder %s79, %s82
      %p88 = scmp.eq.s32.totalorder %s20, 0
      %p89 = por %p87, %p88
      %p90 = scmp.ne.s32.totalorder %s79, %s82
      %p91 = scmp.eq.s32.totalorder %s25, 1
      %p92 = por %p90, %p91
      %p93 = scmp.ne.s32.totalorder %s82, %s83
      %p94 = scmp.eq.s32.totalorder %s25, 0
      %p95 = por %p93, %p94
      %p96 = scmp.ne.s32.totalorder %s82, %s83
      %p97 = scmp.eq.s32.totalorder %s26, 1
      %p98 = por %p96, %p97
      %p100 = scmp.ne.s32.totalorder %s83, %s99
      %p101 = scmp.eq.s32.totalorder %s26, 0
      %p102 = por %p100, %p101
      %s104 = sadd.s32 %s103, 1
      %p107 = scmp.eq.s32.totalorder %s20, 1
      %p108 = scmp.ne.s32.totalorder %s103, %s105
      %p109 = scmp.eq.s32.totalorder %s20, 0
      %p110 = por %p108, %p109
      %p111 = scmp.ne.s32.totalorder %s103, %s105
      %p112 = scmp.eq.s32.totalorder %s25, 1
      %p113 = por %p111, %p112
      %p114 = scmp.ne.s32.totalorder %s105, %s106
      %p115 = scmp.eq.s32.totalorder %s25, 0
      %p116 = por %p114, %p115
      %p117 = scmp.ne.s32.totalorder %s105, %s106
      %p118 = scmp.eq.s32.totalorder %s26, 1
      %p119 = por %p117, %p118
      %p121 = scmp.ne.s32.totalorder %s106, %s120
      %p122 = scmp.eq.s32.totalorder %s26, 0
      %p123 = por %p121, %p122
      %s125 = sadd.s32 %s124, 1
      %p128 = scmp.eq.s32.totalorder %s20, 1
      %p129 = scmp.ne.s32.totalorder %s124, %s126
      %p130 = scmp.eq.s32.totalorder %s20, 0
      %p131 = por %p129, %p130
      %p132 = scmp.ne.s32.totalorder %s124, %s126
      %p133 = scmp.eq.s32.totalorder %s25, 1
      %p134 = por %p132, %p133
      %p135 = scmp.ne.s32.totalorder %s126, %s127
      %p136 = scmp.eq.s32.totalorder %s25, 0
      %p137 = por %p135, %p136
      %p138 = scmp.ne.s32.totalorder %s126, %s127
      %p139 = scmp.eq.s32.totalorder %s26, 1
      %p140 = por %p138, %p139
      %p142 = scmp.ne.s32.totalorder %s127, %s141
      %p143 = scmp.eq.s32.totalorder %s26, 0
      %p144 = por %p142, %p143
      %s145 = ssub.s32 %s27, %s46
      %s146 = ssub.s32 %s28, %s42
      %s147 = sor.u32 %s145, %s146
      %p148 = scmp.eq.s32.totalorder %s147, 0
      %s150 = sadd.s32 %s149, 1
      %s151 = scalar_select %p148, %s149, %s150
      %p154 = pneg %p148
      %p155 = scmp.eq.s32.totalorder %s20, 1
      %p156 = por %p154, %p155
      %p157 = scmp.ne.s32.totalorder %s149, %s152
      %p158 = scmp.eq.s32.totalorder %s20, 0
      %p159 = por %p157, %p158
      %p160 = scmp.ne.s32.totalorder %s149, %s152
      %p161 = scmp.eq.s32.totalorder %s25, 1
      %p162 = por %p160, %p161
      %p163 = scmp.ne.s32.totalorder %s152, %s153
      %p164 = scmp.eq.s32.totalorder %s25, 0
      %p165 = por %p163, %p164
      %p166 = scmp.ne.s32.totalorder %s152, %s153
      %p167 = scmp.eq.s32.totalorder %s26, 1
      %p168 = por %p166, %p167
      %p170 = scmp.ne.s32.totalorder %s153, %s169
      %p171 = scmp.eq.s32.totalorder %s26, 0
      %p172 = por %p170, %p171
      %p173 = scmp.le.s32.totalorder 1, %s20
      %p174 = scmp.lt.s32.totalorder %s20, 3
      %p175 = pnand %p173, %p174
      %p176 = pneg %p175
      // Predicated region
      $region9: #{tpu_custom_call.1} parent=5 // pred_check
        _
      $region10: #{tpu_custom_call.1} parent=5 // pred_check_branch
        %178 = sbr.rel (%p175) target = $region12
      $region11: #{tpu_custom_call.1} parent=5 // pred_region
        %s179 = ssub.s32 %s20, 1
        // Predicated region
        $region13: #{tpu_custom_call.1} parent=11 // pred_check
          %p180 = pneg %p116
        $region14: #{tpu_custom_call.1} parent=11 // pred_check_branch
          %182 = sbr.rel (%p180) target = $region16
        $region15: #{tpu_custom_call.1} parent=11 // pred_region
          %184 = vsyncadd [#allocation10], 0
          %s185 = sshll.u32 %s2, 4
          %s186 = int_to_ptr.hbm [resolvable:$true] %s185
          %s187 = sshll.u32 [#allocation11], 4
          %s188 = int_to_ptr.vmem [resolvable:$true] %s187
          %193 = dma.hbm_to_vmem [thread:$0]  %s186, 6144, %s188, [#allocation10], 384, 384, 24
        $region16: #{tpu_custom_call.1} parent=11 // pred_fallthru
          _
        // Predicated region
        $region17: #{tpu_custom_call.1} parent=11 // pred_check
          %p194 = pneg %p137
        $region18: #{tpu_custom_call.1} parent=11 // pred_check_branch
          %196 = sbr.rel (%p194) target = $region20
        $region19: #{tpu_custom_call.1} parent=11 // pred_region
          %198 = vsyncadd [#allocation13], 0
          %s200 = sshll.u32 %s3, 4
          %s201 = int_to_ptr.hbm [resolvable:$true] %s200
          %s202 = sshll.u32 [#allocation12], 4
          %s203 = int_to_ptr.vmem [resolvable:$true] %s202
          %205 = dma.hbm_to_vmem [thread:$0]  %s201, 48, %s203, [#allocation13]
        $region20: #{tpu_custom_call.1} parent=11 // pred_fallthru
          _
      $region12: #{tpu_custom_call.1} parent=5 // pred_fallthru
        _
      %p206 = scmp.lt.s32.totalorder %s20, 2
      // Predicated region
      $region21: #{tpu_custom_call.1} parent=5 // pred_check
        %p207 = pneg %p206
      $region22: #{tpu_custom_call.1} parent=5 // pred_check_branch
        %209 = sbr.rel (%p207) target = $region24
      $region23: #{tpu_custom_call.1} parent=5 // pred_region
        // Predicated region
        $region25: #{tpu_custom_call.1} parent=23 // pred_check
          %p210 = pneg %p61
        $region26: #{tpu_custom_call.1} parent=23 // pred_check_branch
          %212 = sbr.rel (%p210) target = $region28
        $region27: #{tpu_custom_call.1} parent=23 // pred_region
          %s213 = sand.u32 %s51, 1
          %s214 = scalar_lea.sflag [#allocation7], %s213
          %s215 = sand.u32 %s51, 1
          %s216 = smul.addr %s215, 8
          %s217 = scalar_lea.vmem [#allocation6], %s216
          %219 = vsyncadd %s214, 0
          %s220 = sadd.s32 %s28, %s27
          %s221 = smul.addr %s220, 8
          %s222 = scalar_lea.hbm %s0, %s221
          %s224 = sshll.u32 %s222, 4
          %s225 = int_to_ptr.hbm [resolvable:$true] %s224
          %s226 = sshll.u32 %s217, 4
          %s227 = int_to_ptr.vmem [resolvable:$true] %s226
          %229 = dma.hbm_to_vmem [thread:$0]  %s225, 128, %s227, %s214
        $region28: #{tpu_custom_call.1} parent=23 // pred_fallthru
          _
        // Predicated region
        $region29: #{tpu_custom_call.1} parent=23 // pred_check
          %p230 = pneg %p89
        $region30: #{tpu_custom_call.1} parent=23 // pred_check_branch
          %232 = sbr.rel (%p230) target = $region32
        $region31: #{tpu_custom_call.1} parent=23 // pred_region
          %s233 = sand.u32 %s20, 1
          %s234 = scalar_lea.sflag [#allocation10], %s233
          %s235 = sand.u32 %s79, 1
          %s236 = smul.addr %s235, 8
          %s237 = scalar_lea.vmem [#allocation9], %s236
          %239 = vsyncadd %s234, 0
          %s240 = sadd.s32 %s29, %s27
          %s241 = smul.addr %s240, 8
          %s242 = scalar_lea.hbm %s1, %s241
          %s244 = sshll.u32 %s242, 4
          %s245 = int_to_ptr.hbm [resolvable:$true] %s244
          %s246 = sshll.u32 %s237, 4
          %s247 = int_to_ptr.vmem [resolvable:$true] %s246
          %249 = dma.hbm_to_vmem [thread:$0]  %s245, 128, %s247, %s234
        $region32: #{tpu_custom_call.1} parent=23 // pred_fallthru
          _
      $region24: #{tpu_custom_call.1} parent=5 // pred_fallthru
        _
      %p250 = scmp.le.s32.totalorder 1, %s20
      %p251 = scmp.lt.s32.totalorder %s20, 3
      %p252 = pnand %p250, %p251
      %p253 = pneg %p252
      // Predicated region
      $region33: #{tpu_custom_call.1} parent=5 // pred_check
        _
      $region34: #{tpu_custom_call.1} parent=5 // pred_check_branch
        %255 = sbr.rel (%p252) target = $region36
      $region35: #{tpu_custom_call.1} parent=5 // pred_region
        %s256 = ssub.s32 %s20, 1
        %s257 = sand.u32 %s54, 1
        %s258 = scalar_lea.sflag [#allocation7], %s257
        %s259 = sand.u32 %s54, 1
        %s260 = smul.addr %s259, 8
        %s261 = scalar_lea.vmem [#allocation6], %s260
        // Predicated region
        $region37: #{tpu_custom_call.1} parent=35 // pred_check
          %p262 = pneg %p67
        $region38: #{tpu_custom_call.1} parent=35 // pred_check_branch
          %264 = sbr.rel (%p262) target = $region40
        $region39: #{tpu_custom_call.1} parent=35 // pred_region
          %266 = dma.done %s258, 128
        $region40: #{tpu_custom_call.1} parent=35 // pred_fallthru
          _
        %s267 = sand.u32 %s25, 1
        %s268 = scalar_lea.sflag [#allocation10], %s267
        %s269 = sand.u32 %s82, 1
        %s270 = smul.addr %s269, 8
        %s271 = scalar_lea.vmem [#allocation9], %s270
        // Predicated region
        $region41: #{tpu_custom_call.1} parent=35 // pred_check
          %p272 = pneg %p95
        $region42: #{tpu_custom_call.1} parent=35 // pred_check_branch
          %274 = sbr.rel (%p272) target = $region44
        $region43: #{tpu_custom_call.1} parent=35 // pred_region
          %276 = dma.done %s268, 128
        $region44: #{tpu_custom_call.1} parent=35 // pred_fallthru
          _
        // Predicated region
        $region45: #{tpu_custom_call.1} parent=35 // pred_check
          %p277 = pneg %p116
        $region46: #{tpu_custom_call.1} parent=35 // pred_check_branch
          %279 = sbr.rel (%p277) target = $region48
        $region47: #{tpu_custom_call.1} parent=35 // pred_region
          %281 = dma.done [#allocation10], 6144
        $region48: #{tpu_custom_call.1} parent=35 // pred_fallthru
          _
        // Predicated region
        $region49: #{tpu_custom_call.1} parent=35 // pred_check
          %p282 = pneg %p137
        $region50: #{tpu_custom_call.1} parent=35 // pred_check_branch
          %284 = sbr.rel (%p282) target = $region52
        $region51: #{tpu_custom_call.1} parent=35 // pred_region
          %286 = dma.done [#allocation13], 48
        $region52: #{tpu_custom_call.1} parent=35 // pred_fallthru
          _
        %s287 = sand.u32 %s54, 1
        %s288 = scalar_lea.sflag [#allocation7], %s287
        %s289 = sand.u32 %s54, 1
        %s290 = smul.addr %s289, 8
        %s291 = scalar_lea.vmem [#allocation6], %s290
        %p292 = pneg %p67
        %p293 = pneg %p64
        %s294 = sand.u32 %s25, 1
        %s295 = scalar_lea.sflag [#allocation10], %s294
        %s296 = sand.u32 %s82, 1
        %s297 = smul.addr %s296, 8
        %s298 = scalar_lea.vmem [#allocation9], %s297
        %p299 = pneg %p95
        %p300 = pneg %p92
        %p301 = pneg %p116
        %p302 = pneg %p113
        %p303 = pneg %p137
        %p304 = pneg %p134
        %p305 = pneg %p165
        %p306 = pneg %p162
        %s307 = sand.u32 %s152, 1
        %s308 = scalar_lea.sflag [#allocation8], %s307
        %s309 = sand.u32 %s152, 1
        %s310 = smul.addr %s309, 8
        %s311 = scalar_lea.vmem [#allocation14], %s310
        %p312 = scmp.eq.s32.totalorder %s32, 0
        // Predicated region
        $region53: #{tpu_custom_call.1} parent=35 // pred_check
          %p313 = pneg %p312
        $region54: #{tpu_custom_call.1} parent=35 // pred_check_branch
          %315 = sbr.rel (%p313) target = $region56
        $region55: #{tpu_custom_call.1} parent=35 // pred_region
          %v316 = vld [vmem:[%s261] sm:$0xff]
          %v317 = vld [vmem:[#allocation11] sm:$0xff]
          %v318 = vld [vmem:[#allocation11 + $0x18] sm:$0xff]
          %v319 = vld [vmem:[#allocation11 + $0x30] sm:$0xff]
          %v320 = vld [vmem:[#allocation11 + $0x48] sm:$0xff]
          %v321 = vld [vmem:[#allocation11 + $0x60] sm:$0xff]
          %v322 = vld [vmem:[#allocation11 + $0x78] sm:$0xff]
          %v323 = vld [vmem:[#allocation11 + $0x90] sm:$0xff]
          %v324 = vld [vmem:[#allocation11 + $0xa8] sm:$0xff]
          %v325 = vld [vmem:[#allocation11 + $0xc0] sm:$0xff]
          %v326 = vld [vmem:[#allocation11 + $0xd8] sm:$0xff]
          %v327 = vld [vmem:[#allocation11 + $0xf0] sm:$0xff]
          %v328 = vld [vmem:[#allocation11 + $0x108] sm:$0xff]
          %v329 = vld [vmem:[#allocation11 + $0x120] sm:$0xff]
          %v330 = vld [vmem:[#allocation11 + $0x138] sm:$0xff]
          %v331 = vld [vmem:[#allocation11 + $0x150] sm:$0xff]
          %v332 = vld [vmem:[#allocation11 + $0x168] sm:$0xff]
          %v333 = vld [vmem:[#allocation12] sm:$0x1]
          %v335 = vperm.slane %v333, 0
          %337 = vmatpush.msra.mxu0 %v332
          %338 = vmatpush.msra.mxu0 %v331
          %339 = vmatpush.msra.mxu0 %v330
          %340 = vmatpush.msra.mxu0 %v329
          %341 = vmatpush.msra.mxu0 %v328
          %342 = vmatpush.msra.mxu0 %v327
          %343 = vmatpush.msra.mxu0 %v326
          %344 = vmatpush.msra.mxu0 %v325
          %345 = vmatpush.msra.mxu0 %v324
          %346 = vmatpush.msra.mxu0 %v323
          %347 = vmatpush.msra.mxu0 %v322
          %348 = vmatpush.msra.mxu0 %v321
          %349 = vmatpush.msra.mxu0 %v320
          %350 = vmatpush.msra.mxu0 %v319
          %351 = vmatpush.msra.mxu0 %v318
          %352 = vmatpush.msra.mxu0 %v317
          %353 = vmatmul.f32.gmra.mxu0 %v316
          %v354 = vpop.f32.mrf.mxu0
          %v355 = vadd.f32 %v335, %v354
          %356 = vdwg.mxu0
          %v357 = vmul.f32 %v355, 0.17677669
          %358 = vst [vmem:[#allocation2] sm:$0xff] %v357
          %vm359 = vcmask 7168
          %360 = vst.msk [vmem:[#allocation3] sm:$0xff] %vm359, -inf
          %361 = vst.msk [vmem:[#allocation4] sm:$0xff] %vm359, 0.0
          %362 = vst [vmem:[#allocation5] sm:$0xff] 0.0
        $region56: #{tpu_custom_call.1} parent=35 // pred_fallthru
          _
        %v363 = vld [vmem:[%s271] sm:$0xff]
        %v364 = vld [vmem:[#allocation11 + $0x8] sm:$0xff]
        %v365 = vld [vmem:[#allocation11 + $0x10] sm:$0xff]
        %v366 = vld [vmem:[#allocation11 + $0x20] sm:$0xff]
        %v367 = vld [vmem:[#allocation11 + $0x28] sm:$0xff]
        %v368 = vld [vmem:[#allocation11 + $0x38] sm:$0xff]
        %v369 = vld [vmem:[#allocation11 + $0x40] sm:$0xff]
        %v370 = vld [vmem:[#allocation11 + $0x50] sm:$0xff]
        %v371 = vld [vmem:[#allocation11 + $0x58] sm:$0xff]
        %v372 = vld [vmem:[#allocation11 + $0x68] sm:$0xff]
        %v373 = vld [vmem:[#allocation11 + $0x70] sm:$0xff]
        %v374 = vld [vmem:[#allocation11 + $0x80] sm:$0xff]
        %v375 = vld [vmem:[#allocation11 + $0x88] sm:$0xff]
        %v376 = vld [vmem:[#allocation11 + $0x98] sm:$0xff]
        %v377 = vld [vmem:[#allocation11 + $0xa0] sm:$0xff]
        %v378 = vld [vmem:[#allocation11 + $0xb0] sm:$0xff]
        %v379 = vld [vmem:[#allocation11 + $0xb8] sm:$0xff]
        %v380 = vld [vmem:[#allocation11 + $0xc8] sm:$0xff]
        %v381 = vld [vmem:[#allocation11 + $0xd0] sm:$0xff]
        %v382 = vld [vmem:[#allocation11 + $0xe0] sm:$0xff]
        %v383 = vld [vmem:[#allocation11 + $0xe8] sm:$0xff]
        %v384 = vld [vmem:[#allocation11 + $0xf8] sm:$0xff]
        %v385 = vld [vmem:[#allocation11 + $0x100] sm:$0xff]
        %v386 = vld [vmem:[#allocation11 + $0x110] sm:$0xff]
        %v387 = vld [vmem:[#allocation11 + $0x118] sm:$0xff]
        %v388 = vld [vmem:[#allocation11 + $0x128] sm:$0xff]
        %v389 = vld [vmem:[#allocation11 + $0x130] sm:$0xff]
        %v390 = vld [vmem:[#allocation11 + $0x140] sm:$0xff]
        %v391 = vld [vmem:[#allocation11 + $0x148] sm:$0xff]
        %v392 = vld [vmem:[#allocation11 + $0x158] sm:$0xff]
        %v393 = vld [vmem:[#allocation11 + $0x160] sm:$0xff]
        %v394 = vld [vmem:[#allocation11 + $0x170] sm:$0xff]
        %v395 = vld [vmem:[#allocation11 + $0x178] sm:$0xff]
        %v396 = vld [vmem:[#allocation12 + $0x1] sm:$0x3]
        %v398 = vperm.slane %v396, 0
        %v399 = vperm.slane %v396, 1
        %402 = vmatpush.msra.mxu0 %v394
        %403 = vmatpush.msra.mxu0 %v392
        %404 = vmatpush.msra.mxu0 %v390
        %405 = vmatpush.msra.mxu0 %v388
        %406 = vmatpush.msra.mxu0 %v386
        %407 = vmatpush.msra.mxu0 %v384
        %408 = vmatpush.msra.mxu0 %v382
        %409 = vmatpush.msra.mxu0 %v380
        %410 = vmatpush.msra.mxu0 %v378
        %411 = vmatpush.msra.mxu0 %v376
        %412 = vmatpush.msra.mxu0 %v374
        %413 = vmatpush.msra.mxu0 %v372
        %414 = vmatpush.msra.mxu0 %v370
        %415 = vmatpush.msra.mxu0 %v368
        %416 = vmatpush.msra.mxu0 %v366
        %417 = vmatpush.msra.mxu0 %v364
        %418 = vmatmul.f32.gmra.mxu0 %v363
        %v419 = vpop.f32.mrf.mxu0
        %v420 = vadd.f32 %v398, %v419
        %421 = vdwg.mxu0
        %422 = vmatpush.msra.mxu0 %v395
        %423 = vmatpush.msra.mxu0 %v393
        %424 = vmatpush.msra.mxu0 %v391
        %425 = vmatpush.msra.mxu0 %v389
        %426 = vmatpush.msra.mxu0 %v387
        %427 = vmatpush.msra.mxu0 %v385
        %428 = vmatpush.msra.mxu0 %v383
        %429 = vmatpush.msra.mxu0 %v381
        %430 = vmatpush.msra.mxu0 %v379
        %431 = vmatpush.msra.mxu0 %v377
        %432 = vmatpush.msra.mxu0 %v375
        %433 = vmatpush.msra.mxu0 %v373
        %434 = vmatpush.msra.mxu0 %v371
        %435 = vmatpush.msra.mxu0 %v369
        %436 = vmatpush.msra.mxu0 %v367
        %437 = vmatpush.msra.mxu0 %v365
        %438 = vmatmul.f32.gmra.mxu0 %v363
        %v439 = vpop.f32.mrf.mxu0
        %v440 = vadd.f32 %v399, %v439
        %441 = vdwg.mxu0
        %v442 = vld [vmem:[#allocation2] sm:$0xff]
        %443 = vmatpush.xpose.msra.mxu0 0.0
        %444 = vmatpush.xpose.msra.mxu0 0.0
        %445 = vmatpush.xpose.msra.mxu0 0.0
        %446 = vmatpush.xpose.msra.mxu0 0.0
        %447 = vmatpush.xpose.msra.mxu0 0.0
        %448 = vmatpush.xpose.msra.mxu0 0.0
        %449 = vmatpush.xpose.msra.mxu0 0.0
        %450 = vmatpush.xpose.msra.mxu0 0.0
        %451 = vmatpush.xpose.msra.mxu0 0.0
        %452 = vmatpush.xpose.msra.mxu0 0.0
        %453 = vmatpush.xpose.msra.mxu0 0.0
        %454 = vmatpush.xpose.msra.mxu0 0.0
        %455 = vmatpush.xpose.msra.mxu0 0.0
        %456 = vmatpush.xpose.msra.mxu0 0.0
        %457 = vmatpush.xpose.msra.mxu0 0.0
        %458 = vmatpush.xpose.msra.mxu0 %v420
        %459 = vmatmul.f32.gmra.mxu0 %v442
        %v460 = vpop.f32.mrf.mxu0
        %v461 = vadd.f32 0.0, %v460
        %462 = vdwg.mxu0
        %v463 = vld [vmem:[#allocation3] sm:$0xff]
        %vm464 = vcmask 64512
        %v465 = vsel %vm464, %v461, -inf
        %466 = vmax.xlane.f32.xlu0 %v465
        %v467 = vpop.xlane.xlu0 %466
        %v468 = vmax.f32 %v463, %v467
        %v469 = vsub.f32 %v463, %v468
        %v470 = vmul.f32 %v469, 1.442695
        %v471 = vpow.pop %v470
        %473 = vset.pattern.permute.xlu0 0
        %474 = vperm.xlu0 %473, %v468
        %v475 = vpop.permute.xlu0 %474
        %v477 = vsub.f32 %v461, %v475
        %v478 = vmul.f32 %v477, 1.442695
        %v479 = vpow.pop %v478
        %v480 = vld [vmem:[#allocation4] sm:$0xff]
        %v481 = vmul.f32 %v471, %v480
        %v482 = vsel %vm464, %v479, 0.0
        %483 = vadd.xlane.f32.xlu0 %v482
        %v484 = vpop.xlane.xlu0 %483
        %v485 = vadd.f32 %v481, %v484
        %vm486 = vcmask 7168
        %487 = vst.msk [vmem:[#allocation4] sm:$0xff] %vm486, %v485
        %v488 = vld [vmem:[#allocation5] sm:$0xff]
        %490 = vset.pattern.permute.xlu0 0
        %491 = vperm.xlu0 %490, %v471
        %v492 = vpop.permute.xlu0 %491
        %v494 = vmul.f32 %v492, %v488
        %v496 = vsel %vm464, %v479, 0
        %498 = vmatpush.msra.mxu0 0.0
        %499 = vmatpush.msra.mxu0 0.0
        %500 = vmatpush.msra.mxu0 0.0
        %501 = vmatpush.msra.mxu0 0.0
        %502 = vmatpush.msra.mxu0 0.0
        %503 = vmatpush.msra.mxu0 0.0
        %504 = vmatpush.msra.mxu0 0.0
        %505 = vmatpush.msra.mxu0 0.0
        %506 = vmatpush.msra.mxu0 0.0
        %507 = vmatpush.msra.mxu0 0.0
        %508 = vmatpush.msra.mxu0 0.0
        %509 = vmatpush.msra.mxu0 0.0
        %510 = vmatpush.msra.mxu0 0.0
        %511 = vmatpush.msra.mxu0 0.0
        %512 = vmatpush.msra.mxu0 0.0
        %513 = vmatpush.msra.mxu0 %v440
        %514 = vmatmul.f32.gmra.mxu0 %v496
        %v515 = vpop.f32.mrf.mxu0
        %v516 = vadd.f32 0.0, %v515
        %517 = vdwg.mxu0
        %v518 = vadd.f32 %v494, %v516
        %519 = vst [vmem:[#allocation5] sm:$0xff] %v518
        %520 = vst.msk [vmem:[#allocation3] sm:$0xff] %vm486, %v468
        // Predicated region
        $region57: #{tpu_custom_call.1} parent=35 // pred_check
          %p521 = pneg %p312
        $region58: #{tpu_custom_call.1} parent=35 // pred_check_branch
          %523 = sbr.rel (%p521) target = $region60
        $region59: #{tpu_custom_call.1} parent=35 // pred_region
          %v524 = vld [vmem:[#allocation4] sm:$0xff]
          %v525 = vrcp.pop %v524
          %v526 = vmul.f32 %v524, %v525
          %v527 = vsub.f32 1.0, %v526
          %v528 = vmul.f32 %v525, %v527
          %v529 = vadd.f32 %v525, %v528
          %vm530 = vweird.f32 %v524
          %vm531 = vweird.f32 %v525
          %vm532 = vmor %vm530, %vm531
          %v533 = vsel %vm532, %v525, %v529
          %v534 = vand.u32 2147483647, %v524
          %vm535 = vcmp.eq.f32.partialorder %v534, 8.507059e+37
          %v536 = vand.u32 %v524, 2147483648
          %v537 = vor.u32 1.1754944e-38, %v536
          %v538 = vsel %vm535, %v537, %v533
          %v539 = vld [vmem:[#allocation5] sm:$0xff]
          %541 = vset.pattern.permute.xlu0 0
          %542 = vperm.xlu0 %541, %v538
          %v543 = vpop.permute.xlu0 %542
          %v545 = vmul.f32 %v539, %v543
          %546 = vst [vmem:[%s311] sm:$0xff] %v545
        $region60: #{tpu_custom_call.1} parent=35 // pred_fallthru
          _
        %s547 = sand.u32 %s152, 1
        %s548 = scalar_lea.sflag [#allocation8], %s547
        %s549 = sand.u32 %s152, 1
        %s550 = smul.addr %s549, 8
        %s551 = scalar_lea.vmem [#allocation14], %s550
        // Predicated region
        $region61: #{tpu_custom_call.1} parent=35 // pred_check
          %p552 = pneg %p162
        $region62: #{tpu_custom_call.1} parent=35 // pred_check_branch
          %554 = sbr.rel (%p552) target = $region64
        $region63: #{tpu_custom_call.1} parent=35 // pred_region
          %556 = vsyncadd %s548, 0
          %s557 = sadd.s32 %s31, %s30
          %s558 = smul.addr %s557, 8
          %s559 = scalar_lea.hbm %s4, %s558
          %s561 = sshll.u32 %s551, 4
          %s562 = int_to_ptr.vmem [resolvable:$true] %s561
          %s563 = sshll.u32 %s559, 4
          %s564 = int_to_ptr.hbm [resolvable:$true] %s563
          %566 = dma.vmem_to_hbm [thread:$0]  %s562, 128, %s564, %s548
        $region64: #{tpu_custom_call.1} parent=35 // pred_fallthru
          _
      $region36: #{tpu_custom_call.1} parent=5 // pred_fallthru
        _
      %p567 = scmp.le.s32.totalorder 2, %s20
      // Predicated region
      $region65: #{tpu_custom_call.1} parent=5 // pred_check
        %p568 = pneg %p567
      $region66: #{tpu_custom_call.1} parent=5 // pred_check_branch
        %570 = sbr.rel (%p568) target = $region68
      $region67: #{tpu_custom_call.1} parent=5 // pred_region
        %s571 = ssub.s32 %s20, 2
        // Predicated region
        $region69: #{tpu_custom_call.1} parent=67 // pred_check
          %p572 = pneg %p168
        $region70: #{tpu_custom_call.1} parent=67 // pred_check_branch
          %574 = sbr.rel (%p572) target = $region72
        $region71: #{tpu_custom_call.1} parent=67 // pred_region
          %s575 = sand.u32 %s153, 1
          %s576 = scalar_lea.sflag [#allocation8], %s575
          %s577 = sand.u32 %s153, 1
          %s578 = smul.addr %s577, 8
          %s579 = scalar_lea.vmem [#allocation14], %s578
          %581 = dma.done %s576, 128
        $region72: #{tpu_custom_call.1} parent=67 // pred_fallthru
          _
      $region68: #{tpu_custom_call.1} parent=5 // pred_fallthru
        _
    $region6: #{tpu_custom_call.1} parent=1 // loop_footer
      %s24 = sadd.s32 1, %s20
    $region7: #{tpu_custom_call.1} parent=1 // loop_footer_branch
      %19 = sbr.rel target = $region3
    $region8: #{tpu_custom_call.1} parent=1 // loop_exit
      _
    %582 = vsyncpa [#allocation7], 1
    %s583 = scalar_lea.sflag [#allocation7], 1
    %584 = vsyncpa %s583, 1
    %585 = vsyncpa [#allocation10], 1
    %s586 = scalar_lea.sflag [#allocation10], 1
    %587 = vsyncpa %s586, 1
    %588 = vsyncpa [#allocation13], 1
    %589 = vsyncpa [#allocation8], 1
    %s590 = scalar_lea.sflag [#allocation8], 1
    %591 = vsyncpa %s590, 1

</llo_original>
